<compile_context>
chip_gen: v5e
topology: v5e:2x2
jax: 0.10.0
libtpu: 0.0.40
codegen_flags: <defaults>
</compile_context>

<pallas_src>
import functools

import jax
import jax.numpy as jnp
from jax.experimental import pallas as pl
from jax.experimental.pallas import tpu as pltpu

_LANES = 128
_SUBLANES = 8
_MIN_PALLAS_D = _SUBLANES * _LANES      # below ~1 f32 vreg: XLA's fused softmax wins
_TILE_ROWS_DEFAULT = 8192               # 4 MiB f32 tiles (~90% of HBM roofline on v5e/v6e)
_TILE_ROWS_SMALL_VMEM = 16384           # 8 MiB tiles on small-VMEM / high-BW chips (v7x)

_CompilerParams = getattr(pltpu, "CompilerParams", None) or getattr(pltpu, "TPUCompilerParams")
try:
    _SMEM = pltpu.MemorySpace.SMEM
except AttributeError:                  # older spelling
    _SMEM = pltpu.SMEM


def _round_up(n, m):
    return ((n + m - 1) // m) * m


def _vmem_capacity_bytes():
    """Per-core VMEM capacity; all VMEM budgets are generation-gated off this."""
    try:
        return int(pltpu.get_tpu_info().vmem_capacity_bytes)
    except Exception:
        return 64 * 1024 * 1024         # conservative default (v7x per-TensorCore VMEM)


def _compiler_params(dim_semantics, vmem_limit_bytes):
    return _CompilerParams(dimension_semantics=dim_semantics,
                           vmem_limit_bytes=int(vmem_limit_bytes))


# --------------------- fused single-pass kernel (1 HBM read + 1 HBM write) ---------------------

def _softmax_fused_kernel(z_ref, out_ref, zbuf_ref, m_ref, s_ref, *, tile_rows, total_rows):
    """grid = (2, n_tiles).

    p == 0: stream tile i from HBM, stash it in the resident VMEM scratch, update online (m, s).
    p == 1: re-read tile i from the VMEM scratch (not HBM), normalize, stream it out.
    """
    p = pl.program_id(0)
    i = pl.program_id(1)

    @pl.when(jnp.logical_and(p == 0, i == 0))
    def _():
        m_ref[...] = jnp.full(m_ref.shape, -jnp.inf, jnp.float32)
        s_ref[...] = jnp.zeros(s_ref.shape, jnp.float32)

    @pl.when(p == 0)
    def _():
        z_raw = z_ref[...]
        off = pl.multiple_of(i * tile_rows, tile_rows)
        zbuf_ref[pl.ds(off, tile_rows), :] = z_raw              # keep resident for phase 1
        z = z_raw.astype(jnp.float32)                           # in-kernel upcast (bf16 ok)
        row = i * tile_rows + jax.lax.broadcasted_iota(jnp.int32, z.shape, 0)
        z = jnp.where(row < total_rows, z, -jnp.inf)            # mask rows past the array end
        m_old = m_ref[...]
        m_tile = jnp.max(jnp.max(z, axis=0, keepdims=True), axis=1, keepdims=True)
        m_new = jnp.maximum(m_old, m_tile)
        e = jnp.exp(z - m_new)
        s_tile = jnp.sum(jnp.sum(e, axis=0, keepdims=True), axis=1, keepdims=True)
        scale = jnp.where(m_old == -jnp.inf, 0.0, jnp.exp(m_old - m_new))   # -inf/-inf NaN guard
        s_ref[...] = s_ref[...] * scale + s_tile
        m_ref[...] = m_new

    @pl.when(p == 1)
    def _():
        off = pl.multiple_of(i * tile_rows, tile_rows)
        z = zbuf_ref[pl.ds(off, tile_rows), :].astype(jnp.float32)
        inv_s = 1.0 / s_ref[...]                                 # exact divide, once per tile
        out_ref[...] = (jnp.exp(z - m_ref[...]) * inv_s).astype(out_ref.dtype)


def _softmax_fused(z2d, rows, tile_rows, n_tiles, vmem_limit):
    kernel = functools.partial(_softmax_fused_kernel, tile_rows=tile_rows, total_rows=rows)
    return pl.pallas_call(
        kernel,
        out_shape=jax.ShapeDtypeStruct((rows, _LANES), z2d.dtype),
        grid_spec=pltpu.PrefetchScalarGridSpec(
            num_scalar_prefetch=0,
            grid=(2, n_tiles),
            # phase 0 walks the tiles; phase 1 pins block 0 (no HBM re-read).
            in_specs=[pl.BlockSpec((tile_rows, _LANES), lambda p, i: ((1 - p) * i, 0))],
            # phase 0 keeps out-block 0 resident (never flushed); phase 1 walks + flushes tiles.
            out_specs=pl.BlockSpec((tile_rows, _LANES), lambda p, i: (p * i, 0)),
            scratch_shapes=[pltpu.VMEM((n_tiles * tile_rows, _LANES), z2d.dtype),
                            pltpu.VMEM((1, 1), jnp.float32),
                            pltpu.VMEM((1, 1), jnp.float32)]),
        compiler_params=_compiler_params(("arbitrary", "arbitrary"), vmem_limit),
    )(z2d)


# ---------------------- two-pass streaming fallback (z does not fit in VMEM) --------------------

def _softmax_reduce_kernel(z_ref, m_ref, s_ref, *, tile_rows, total_rows):
    i = pl.program_id(0)

    @pl.when(i == 0)
    def _():
        m_ref[...] = jnp.full(m_ref.shape, -jnp.inf, jnp.float32)
        s_ref[...] = jnp.zeros(s_ref.shape, jnp.float32)

    z = z_ref[...].astype(jnp.float32)
    row = i * tile_rows + jax.lax.broadcasted_iota(jnp.int32, z.shape, 0)
    z = jnp.where(row < total_rows, z, -jnp.inf)                 # mask partial last tile
    m_old = m_ref[...]
    m_tile = jnp.max(jnp.max(z, axis=0, keepdims=True), axis=1, keepdims=True)
    m_new = jnp.maximum(m_old, m_tile)
    e = jnp.exp(z - m_new)
    s_tile = jnp.sum(jnp.sum(e, axis=0, keepdims=True), axis=1, keepdims=True)
    scale = jnp.where(m_old == -jnp.inf, 0.0, jnp.exp(m_old - m_new))
    s_ref[...] = s_ref[...] * scale + s_tile
    m_ref[...] = m_new


def _softmax_normalize_kernel(ms_ref, z_ref, out_ref):
    m = ms_ref[0]            # SMEM scalars: global max and 1/sum (scalar splat, no VMEM tile)
    inv_s = ms_ref[1]
    z = z_ref[...].astype(jnp.float32)
    out_ref[...] = (jnp.exp(z - m) * inv_s).astype(out_ref.dtype)


def _softmax_two_pass(z2d, rows, tile_rows, n_tiles, vmem_limit):
    # TODO(synk): on v7x, split this reduce over a leading "parallel" grid axis (one partial
    # (m, s) per TensorCore) so both cores share pass-1's HBM read; combine partials below.
    reduce_kernel = functools.partial(_softmax_reduce_kernel,
                                      tile_rows=tile_rows, total_rows=rows)
    m_arr, s_arr = pl.pallas_call(
        reduce_kernel,
        out_shape=(jax.ShapeDtypeStruct((1, 1), jnp.float32),
                   jax.ShapeDtypeStruct((1, 1), jnp.float32)),
        grid_spec=pltpu.PrefetchScalarGridSpec(
            num_scalar_prefetch=0,
            grid=(n_tiles,),
            in_specs=[pl.BlockSpec((tile_rows, _LANES), lambda i: (i, 0))],
            out_specs=(pl.BlockSpec((1, 1), lambda i: (0, 0)),
                       pl.BlockSpec((1, 1), lambda i: (0, 0)))),
        compiler_params=_compiler_params(("arbitrary",), vmem_limit),
    )(z2d)

    # Fold (m, 1/s) into two SMEM scalars for the normalize pass; exact divide, done once.
    ms = jnp.concatenate([m_arr.reshape(1), 1.0 / s_arr.reshape(1)]).astype(jnp.float32)

    return pl.pallas_call(
        _softmax_normalize_kernel,
        out_shape=jax.ShapeDtypeStruct((rows, _LANES), z2d.dtype),
        grid_spec=pltpu.PrefetchScalarGridSpec(
            num_scalar_prefetch=0,
            grid=(n_tiles,),
            in_specs=[pl.BlockSpec(memory_space=_SMEM),
                      pl.BlockSpec((tile_rows, _LANES), lambda i: (i, 0))],
            out_specs=pl.BlockSpec((tile_rows, _LANES), lambda i: (i, 0))),
        compiler_params=_compiler_params(("parallel",), vmem_limit),
    )(ms, z2d)


# ----------------------------------------- dispatcher -----------------------------------------

def _softmax_2d(z2d, *, tile_rows=None, max_fused_bytes=None):
    rows, lanes = z2d.shape
    assert lanes == _LANES
    itemsize = jnp.dtype(z2d.dtype).itemsize

    cap = _vmem_capacity_bytes()
    vmem_limit = int(cap * 0.75)         # ~48 MiB on v7x (64 MiB/TC), ~96 MiB on v5e/v6e (128 MiB)
    if tile_rows is None:
        # Small-VMEM generations (v7x) also have ~2.3x the HBM BW: they need bigger tiles to
        # keep the ~0.35 us per-grid-step overhead off the roofline.
        tile_rows = _TILE_ROWS_SMALL_VMEM if cap <= (64 << 20) else _TILE_ROWS_DEFAULT
    tile_rows = max(_SUBLANES, _round_up(tile_rows, _SUBLANES))
    tile_rows = min(tile_rows, _round_up(rows, _SUBLANES))
    n_tiles = pl.cdiv(rows, tile_rows)

    tile_bytes = tile_rows * _LANES * itemsize
    tile_f32_bytes = tile_rows * _LANES * 4
    fused_need = (n_tiles * tile_rows * _LANES * itemsize     # resident VMEM stash of z
                  + 4 * tile_bytes                            # double-buffered in + out tiles
                  + 3 * tile_f32_bytes)                       # per-tile f32 temporaries
    if max_fused_bytes is None:
        max_fused_bytes = int(vmem_limit * 0.85)

    if fused_need <= max_fused_bytes:
        return _softmax_fused(z2d, rows, tile_rows, n_tiles, vmem_limit)
    return _softmax_two_pass(z2d, rows, tile_rows, n_tiles, vmem_limit)


def softmax_model_forward(logits, x=None, *, min_pallas_d=_MIN_PALLAS_D,
                          tile_rows=None, max_fused_bytes=None):
    """Equivalent of SoftmaxModel.forward: softmax(logits, dim=0).  `x` is ignored."""
    del x
    d = logits.shape[0]

    if d < min_pallas_d:
        # Sub-vreg problem (the actual homework setting): kernel dispatch + grid-step overhead
        # dominates; XLA's fused softmax wins at this size on every TPU generation.
        return jax.nn.softmax(logits, axis=0)

    if d % _LANES == 0:
        # Zero-copy main path: the (d/128, 128) lane-dense view is a free reshape, the kernel
        # writes its output in the same natural shape, and the reshape back is free.
        out2d = _softmax_2d(logits.reshape(d // _LANES, _LANES),
                            tile_rows=tile_rows, max_fused_bytes=max_fused_bytes)
        return out2d.reshape(d)

    # Ragged d: a 2-D lane-dense view needs one -inf pad and one tail slice (extra HBM passes,
    # but only for non-multiple-of-128 sizes).
    # TODO(synk): zero-copy ragged path (keep logits 1-D via memory_space=pl.ANY + manual DMA).
    rows = pl.cdiv(d, _LANES)
    d_pad = rows * _LANES
    z = jnp.pad(logits, (0, d_pad - d), constant_values=-jnp.inf)
    out2d = _softmax_2d(z.reshape(rows, _LANES),
                        tile_rows=tile_rows, max_fused_bytes=max_fused_bytes)
    return out2d.reshape(d_pad)[:d]


if __name__ == "__main__":
    key = jax.random.PRNGKey(0)
    k1, k2, k3, k4, k5, kx = jax.random.split(key, 6)

    # (1) Homework-scale tiny d -> dispatches to XLA's fused softmax (dispatch overhead).
    d_small = 32
    logits_small = jax.random.normal(k1, (d_small,), dtype=jnp.float32)
    x = jax.random.randint(kx, (8,), 0, d_small, dtype=jnp.int32)    # unused by forward
    p_small = jax.block_until_ready(softmax_model_forward(logits_small, x))
    assert p_small.shape == (d_small,)
    assert jnp.allclose(p_small, jax.nn.softmax(logits_small, axis=0), atol=1e-6)

    # (2) Multiple-of-128 d -> zero-copy fused VMEM-resident path (1 HBM read + 1 HBM write).
    d_mid = 4096
    logits_mid = jax.random.normal(k2, (d_mid,), dtype=jnp.float32)
    p_mid = jax.block_until_ready(softmax_model_forward(logits_mid))
    ref_mid = jax.nn.softmax(logits_mid, axis=0)
    assert p_mid.shape == (d_mid,)
    assert jnp.allclose(p_mid, ref_mid, atol=1e-6)
    assert jnp.allclose(jnp.sum(p_mid), 1.0, atol=1e-5)

    # (3) Ragged d -> pad/slice fallback around the same fused kernel.
    d_ragged = 3000
    logits_ragged = jax.random.normal(k3, (d_ragged,), dtype=jnp.float32)
    p_ragged = jax.block_until_ready(softmax_model_forward(logits_ragged))
    assert p_ragged.shape == (d_ragged,)
    assert jnp.allclose(p_ragged, jax.nn.softmax(logits_ragged, axis=0), atol=1e-6)

    # (4) Force the streaming two-pass path with tiny tiles (exercises the online reduce,
    #     the partial-last-tile masking, and the SMEM (m, 1/s) normalize inputs).
    d_big = 25 * _LANES
    logits_big = jax.random.normal(k4, (d_big,), dtype=jnp.float32)
    p_big = jax.block_until_ready(
        softmax_model_forward(logits_big, tile_rows=8, max_fused_bytes=0))
    assert p_big.shape == (d_big,)
    assert jnp.allclose(p_big, jax.nn.softmax(logits_big, axis=0), atol=1e-6)
    assert jnp.allclose(jnp.sum(p_big), 1.0, atol=1e-5)

    # (5) bf16 logits -> upcast happens inside the kernel (no wrapper astype HBM pass).
    d_bf16 = 2048
    logits_bf16 = jax.random.normal(k5, (d_bf16,), dtype=jnp.float32).astype(jnp.bfloat16)
    p_bf16 = jax.block_until_ready(softmax_model_forward(logits_bf16))
    assert p_bf16.dtype == jnp.bfloat16
    ref_bf16 = jax.nn.softmax(logits_bf16.astype(jnp.float32), axis=0)
    assert jnp.allclose(p_bf16.astype(jnp.float32), ref_bf16, atol=1e-4)

    print("KERNEL_OK")
</pallas_src>

<mosaic_0001>
module attributes {stable_mosaic.version = 11 : i64} {
  func.func @_softmax_fused_kernel(%arg0: i32, %arg1: i32, %arg2: memref<32x128xf32, #tpu.memory_space<vmem>>, %arg3: memref<32x128xf32, #tpu.memory_space<vmem>>, %arg4: memref<32x128xf32, #tpu.memory_space<vmem>>, %arg5: memref<1x1xf32, #tpu.memory_space<vmem>>, %arg6: memref<1x1xf32, #tpu.memory_space<vmem>>) attributes {dimension_semantics = [#tpu.dimension_semantics<arbitrary>, #tpu.dimension_semantics<arbitrary>], iteration_bounds = array<i64: 2, 1>, scalar_prefetch = 0 : i64, scratch_operands = 3 : i64, tpu.core_type = #tpu.core_type<tc>, window_params = [{transform_indices = @transform_0, window_bounds = array<i64: 32, 128>}, {transform_indices = @transform_1, window_bounds = array<i64: 32, 128>}]} {
    %c0_i32 = arith.constant 0 : i32
    %0 = arith.cmpi eq, %arg0, %c0_i32 : i32
    %c0_i32_0 = arith.constant 0 : i32
    %1 = arith.cmpi eq, %arg1, %c0_i32_0 : i32
    %2 = arith.andi %0, %1 : i1
    %3 = arith.extui %2 : i1 to i32
    %c0_i32_1 = arith.constant 0 : i32
    %4 = arith.cmpi ne, %3, %c0_i32_1 : i32
    scf.if %4 {
      %cst = arith.constant 0xFF800000 : f32
      %11 = vector.broadcast %cst : f32 to vector<1x1xf32>
      %c0 = arith.constant 0 : index
      %c0_5 = arith.constant 0 : index
      %12 = vector.load %arg5[%c0, %c0_5] : memref<1x1xf32, #tpu.memory_space<vmem>>, vector<1x1xf32>
      tpu.vector_store %arg5[%c0, %c0_5], %11 {strides = array<i32>} : memref<1x1xf32, #tpu.memory_space<vmem>>, vector<1x1xf32>,
      %cst_6 = arith.constant 0.000000e+00 : f32
      %13 = vector.broadcast %cst_6 : f32 to vector<1x1xf32>
      %c0_7 = arith.constant 0 : index
      %c0_8 = arith.constant 0 : index
      %14 = vector.load %arg6[%c0_7, %c0_8] : memref<1x1xf32, #tpu.memory_space<vmem>>, vector<1x1xf32>
      tpu.vector_store %arg6[%c0_7, %c0_8], %13 {strides = array<i32>} : memref<1x1xf32, #tpu.memory_space<vmem>>, vector<1x1xf32>,
    } else {
    }
    %c0_i32_2 = arith.constant 0 : i32
    %5 = arith.cmpi eq, %arg0, %c0_i32_2 : i32
    %6 = arith.extui %5 : i1 to i32
    %c0_i32_3 = arith.constant 0 : i32
    %7 = arith.cmpi ne, %6, %c0_i32_3 : i32
    scf.if %7 {
      %c0 = arith.constant 0 : index
      %c0_5 = arith.constant 0 : index
      %11 = vector.load %arg2[%c0, %c0_5] : memref<32x128xf32, #tpu.memory_space<vmem>>, vector<32x128xf32>
      %c32_i32 = arith.constant 32 : i32
      %12 = arith.muli %arg1, %c32_i32 : i32
      %13 = tpu.assume_multiple %12, 32 : i32
      %14 = arith.index_cast %13 : i32 to index
      %c0_6 = arith.constant 0 : index
      %15 = vector.load %arg4[%14, %c0_6] : memref<32x128xf32, #tpu.memory_space<vmem>>, vector<32x128xf32>
      tpu.vector_store %arg4[%14, %c0_6], %11 {strides = array<i32>} : memref<32x128xf32, #tpu.memory_space<vmem>>, vector<32x128xf32>,
      %c32_i32_7 = arith.constant 32 : i32
      %16 = arith.muli %arg1, %c32_i32_7 : i32
      %17 = tpu.iota {dimensions = array<i32: 0>} : vector<32x128xi32>
      %18 = vector.broadcast %16 : i32 to vector<32x128xi32>
      %19 = arith.addi %18, %17 : vector<32x128xi32>
      %c32_i32_8 = arith.constant 32 : i32
      %20 = vector.broadcast %c32_i32_8 : i32 to vector<32x128xi32>
      %21 = arith.cmpi slt, %19, %20 : vector<32x128xi32>
      %cst = arith.constant 0xFF800000 : f32
      %22 = vector.broadcast %cst : f32 to vector<32x128xf32>
      %23 = arith.select %21, %11, %22 : vector<32x128xi1>, vector<32x128xf32>
      %c0_9 = arith.constant 0 : index
      %c0_10 = arith.constant 0 : index
      %24 = vector.load %arg5[%c0_9, %c0_10] : memref<1x1xf32, #tpu.memory_space<vmem>>, vector<1x1xf32>
      %cst_11 = arith.constant dense<0xFF800000> : vector<128xf32>
      %25 = vector.multi_reduction <maximumf>, %23, %cst_11 [0] : vector<32x128xf32> to vector<128xf32>
      %26 = vector.shape_cast %25 : vector<128xf32> to vector<1x128xf32>
      %cst_12 = arith.constant dense<0xFF800000> : vector<1xf32>
      %27 = vector.multi_reduction <maximumf>, %26, %cst_12 [1] : vector<1x128xf32> to vector<1xf32>
      %28 = vector.shape_cast %27 : vector<1xf32> to vector<1x1xf32>
      %29 = arith.maximumf %24, %28 : vector<1x1xf32>
      %30 = vector.broadcast %29 : vector<1x1xf32> to vector<32x128xf32>
      %31 = arith.subf %23, %30 : vector<32x128xf32>
      %32 = math.exp %31 : vector<32x128xf32>
      %cst_13 = arith.constant dense<0.000000e+00> : vector<128xf32>
      %33 = vector.multi_reduction <add>, %32, %cst_13 [0] : vector<32x128xf32> to vector<128xf32>
      %34 = vector.shape_cast %33 : vector<128xf32> to vector<1x128xf32>
      %cst_14 = arith.constant dense<0.000000e+00> : vector<1xf32>
      %35 = vector.multi_reduction <add>, %34, %cst_14 [1] : vector<1x128xf32> to vector<1xf32>
      %36 = vector.shape_cast %35 : vector<1xf32> to vector<1x1xf32>
      %cst_15 = arith.constant 0xFF800000 : f32
      %37 = vector.broadcast %cst_15 : f32 to vector<1x1xf32>
      %38 = arith.cmpf oeq, %24, %37 : vector<1x1xf32>
      %39 = arith.subf %24, %29 : vector<1x1xf32>
      %40 = math.exp %39 : vector<1x1xf32>
      %cst_16 = arith.constant 0.000000e+00 : f32
      %41 = vector.broadcast %cst_16 : f32 to vector<1x1xf32>
      %42 = arith.select %38, %41, %40 : vector<1x1xi1>, vector<1x1xf32>
      %c0_17 = arith.constant 0 : index
      %c0_18 = arith.constant 0 : index
      %43 = vector.load %arg6[%c0_17, %c0_18] : memref<1x1xf32, #tpu.memory_space<vmem>>, vector<1x1xf32>
      %44 = arith.mulf %43, %42 : vector<1x1xf32>
      %45 = arith.addf %44, %36 : vector<1x1xf32>
      %c0_19 = arith.constant 0 : index
      %c0_20 = arith.constant 0 : index
      %46 = vector.load %arg6[%c0_19, %c0_20] : memref<1x1xf32, #tpu.memory_space<vmem>>, vector<1x1xf32>
      tpu.vector_store %arg6[%c0_19, %c0_20], %45 {strides = array<i32>} : memref<1x1xf32, #tpu.memory_space<vmem>>, vector<1x1xf32>,
      %c0_21 = arith.constant 0 : index
      %c0_22 = arith.constant 0 : index
      %47 = vector.load %arg5[%c0_21, %c0_22] : memref<1x1xf32, #tpu.memory_space<vmem>>, vector<1x1xf32>
      tpu.vector_store %arg5[%c0_21, %c0_22], %29 {strides = array<i32>} : memref<1x1xf32, #tpu.memory_space<vmem>>, vector<1x1xf32>,
    } else {
    }
    %c1_i32 = arith.constant 1 : i32
    %8 = arith.cmpi eq, %arg0, %c1_i32 : i32
    %9 = arith.extui %8 : i1 to i32
    %c0_i32_4 = arith.constant 0 : i32
    %10 = arith.cmpi ne, %9, %c0_i32_4 : i32
    scf.if %10 {
      %c32_i32 = arith.constant 32 : i32
      %11 = arith.muli %arg1, %c32_i32 : i32
      %12 = tpu.assume_multiple %11, 32 : i32
      %13 = arith.index_cast %12 : i32 to index
      %c0 = arith.constant 0 : index
      %14 = vector.load %arg4[%13, %c0] : memref<32x128xf32, #tpu.memory_space<vmem>>, vector<32x128xf32>
      %c0_5 = arith.constant 0 : index
      %c0_6 = arith.constant 0 : index
      %15 = vector.load %arg6[%c0_5, %c0_6] : memref<1x1xf32, #tpu.memory_space<vmem>>, vector<1x1xf32>
      %cst = arith.constant 1.000000e+00 : f32
      %16 = vector.broadcast %cst : f32 to vector<1x1xf32>
      %17 = arith.divf %16, %15 : vector<1x1xf32>
      %c0_7 = arith.constant 0 : index
      %c0_8 = arith.constant 0 : index
      %18 = vector.load %arg5[%c0_7, %c0_8] : memref<1x1xf32, #tpu.memory_space<vmem>>, vector<1x1xf32>
      %19 = vector.broadcast %18 : vector<1x1xf32> to vector<32x128xf32>
      %20 = arith.subf %14, %19 : vector<32x128xf32>
      %21 = math.exp %20 : vector<32x128xf32>
      %22 = vector.broadcast %17 : vector<1x1xf32> to vector<32x128xf32>
      %23 = arith.mulf %21, %22 : vector<32x128xf32>
      %c0_9 = arith.constant 0 : index
      %c0_10 = arith.constant 0 : index
      %24 = vector.load %arg3[%c0_9, %c0_10] : memref<32x128xf32, #tpu.memory_space<vmem>>, vector<32x128xf32>
      tpu.vector_store %arg3[%c0_9, %c0_10], %23 {strides = array<i32>} : memref<32x128xf32, #tpu.memory_space<vmem>>, vector<32x128xf32>,
    } else {
    }
    return
  }
  func.func @transform_0(%arg0: i32, %arg1: i32) -> (i32, i32) {
    %c1_i32 = arith.constant 1 : i32
    %0 = arith.subi %c1_i32, %arg0 : i32
    %1 = arith.muli %0, %arg1 : i32
    %c0_i32 = arith.constant 0 : i32
    %c0_i32_0 = arith.constant 0 : i32
    return %1, %c0_i32 : i32, i32
  }
  func.func @transform_1(%arg0: i32, %arg1: i32) -> (i32, i32) {
    %0 = arith.muli %arg0, %arg1 : i32
    %c0_i32 = arith.constant 0 : i32
    %c0_i32_0 = arith.constant 0 : i32
    return %0, %c0_i32 : i32, i32
  }
}

</mosaic_0001>

<llo_original>
// kernel: tpu_custom_call.1
$region0: #{tpu_custom_call.1}
  #allocation0 [shape = 'u32[]', space=smem, size = 0x4, offset = 0x4, fixed_abs, tag = 'smem constant byte address 0x4 - core index']
  #allocation1 [shape = 'u32[72,128]{1,0:T(1,128)}', space=vmem, size = 0x9000, scoped, tag = 'internal scratch']
  #allocation2 [shape = 'f32[32,128]{1,0:T(8,128)}', space=vmem, size = 0x4000, scoped, tag = 'scratch operand']
  #allocation3 [shape = 'f32[1,1]{1,0:T(1,128)}', space=vmem, size = 0x200, scoped, tag = 'scratch operand']
  #allocation4 [shape = 'f32[1,1]{1,0:T(1,128)}', space=vmem, size = 0x200, scoped, tag = 'scratch operand']
  %s0 = inlined_call_operand.hbm [shape: f32[32,128], index: 0, kind: input, shape index: {}]
  %s1 = inlined_call_operand.hbm [shape: f32[32,128], index: 1, kind: output, shape index: {}]
  %s2 = sld [smem:[#allocation0]]
  $region53: #{tpu_custom_call.1} parent=0
    _
  %s4 = ssub.s32 1, %s2
  %s5 = scalar_select 0, %s4, %s2
  $region1: #{tpu_custom_call.1} parent=0
    #allocation5 [shape = 'u8[32768]{0}', space=vmem, size = 0x8000, scoped, tag = 'input window, operand 0']
    #allocation6 [shape = 's32[2]{0}', space=sflag, size = 0x8, scoped, tag = 'scoped memory for tpu_custom_call.1']
    #allocation7 [shape = 's32[2]{0}', space=sflag, size = 0x8, scoped, tag = 'scoped memory for tpu_custom_call.1']
    #allocation8 [shape = 'u8[32768]{0}', space=vmem, size = 0x8000, scoped, tag = 'output window, operand 0']
    %6 = vsyncpa [#allocation6], 0
    %s7 = scalar_lea.sflag [#allocation6], 1
    %8 = vsyncpa %s7, 0
    %9 = vsyncpa [#allocation7], 0
    %s10 = scalar_lea.sflag [#allocation7], 1
    %11 = vsyncpa %s10, 0
    loop: start=0, step=1, limit=4
    $region2: #{tpu_custom_call.1} parent=1 // loop_pre_header
      _
    $region3: #{tpu_custom_call.1} parent=1 // loop_header
      %s13 = sphi 0, %s17
      %p14 = scmp.ge.s32.totalorder %s13, 4
      %s20 = sphi 0, %s32
      %s21 = sphi 0, %s28
      %s22 = sphi 0, %s20
      %s23 = sphi 0, %s21
      %s24 = sphi 0, %s22
      %s25 = sphi 0, %s23
      %s39 = sphi 0, %s41
      %s42 = sphi 0, %s39
      %s43 = sphi 0, %s42
      %s59 = sphi 0, %s43
      %s67 = sphi 0, %s69
      %s70 = sphi 0, %s67
      %s71 = sphi 0, %s70
      %s87 = sphi 0, %s71
    $region4: #{tpu_custom_call.1} parent=1 // loop_header_branch
      %16 = sbr.rel (%p14) target = $region8
    $region5: #{tpu_custom_call.1} parent=1 // loop_body
      %s18 = ssub.s32 %s13, 1
      %s19 = ssub.s32 %s13, 2
      %s26 = sadd.s32 1, %s21
      %p27 = scmp.ge.s32.totalorder %s26, 1
      %s28 = scalar_select %p27, 0, %s26
      %s29 = sadd.s32 1, %s20
      %s30 = scalar_select %p27, %s29, %s20
      %p31 = scmp.ge.s32.totalorder %s30, 2
      %s32 = scalar_select %p31, 0, %s30
      %s33 = ssub.s32 1, %s20
      %s34 = smul.u32 %s33, %s21
      %s35 = ssub.s32 1, %s32
      %s36 = smul.u32 %s35, %s28
      %s37 = ssub.s32 %s34, %s36
      %p38 = scmp.eq.s32.totalorder %s37, 0
      %s40 = sadd.s32 %s39, 1
      %s41 = scalar_select %p38, %s39, %s40
      %p44 = pneg %p38
      %p45 = scmp.eq.s32.totalorder %s13, 1
      %p46 = por %p44, %p45
      %p47 = scmp.ne.s32.totalorder %s39, %s42
      %p48 = scmp.eq.s32.totalorder %s13, 0
      %p49 = por %p47, %p48
      %p50 = scmp.ne.s32.totalorder %s39, %s42
      %p51 = scmp.eq.s32.totalorder %s18, 1
      %p52 = por %p50, %p51
      %p53 = scmp.ne.s32.totalorder %s42, %s43
      %p54 = scmp.eq.s32.totalorder %s18, 0
      %p55 = por %p53, %p54
      %p56 = scmp.ne.s32.totalorder %s42, %s43
      %p57 = scmp.eq.s32.totalorder %s19, 1
      %p58 = por %p56, %p57
      %p60 = scmp.ne.s32.totalorder %s43, %s59
      %p61 = scmp.eq.s32.totalorder %s19, 0
      %p62 = por %p60, %p61
      %s63 = smul.u32 %s20, %s21
      %s64 = smul.u32 %s32, %s28
      %s65 = ssub.s32 %s63, %s64
      %p66 = scmp.eq.s32.totalorder %s65, 0
      %s68 = sadd.s32 %s67, 1
      %s69 = scalar_select %p66, %s67, %s68
      %p72 = pneg %p66
      %p73 = scmp.eq.s32.totalorder %s13, 1
      %p74 = por %p72, %p73
      %p75 = scmp.ne.s32.totalorder %s67, %s70
      %p76 = scmp.eq.s32.totalorder %s13, 0
      %p77 = por %p75, %p76
      %p78 = scmp.ne.s32.totalorder %s67, %s70
      %p79 = scmp.eq.s32.totalorder %s18, 1
      %p80 = por %p78, %p79
      %p81 = scmp.ne.s32.totalorder %s70, %s71
      %p82 = scmp.eq.s32.totalorder %s18, 0
      %p83 = por %p81, %p82
      %p84 = scmp.ne.s32.totalorder %s70, %s71
      %p85 = scmp.eq.s32.totalorder %s19, 1
      %p86 = por %p84, %p85
      %p88 = scmp.ne.s32.totalorder %s71, %s87
      %p89 = scmp.eq.s32.totalorder %s19, 0
      %p90 = por %p88, %p89
      %p91 = scmp.le.s32.totalorder 1, %s13
      %p92 = scmp.lt.s32.totalorder %s13, 3
      %p93 = pnand %p91, %p92
      %p94 = pneg %p93
      // Predicated region
      $region9: #{tpu_custom_call.1} parent=5 // pred_check
        _
      $region10: #{tpu_custom_call.1} parent=5 // pred_check_branch
        %96 = sbr.rel (%p93) target = $region12
      $region11: #{tpu_custom_call.1} parent=5 // pred_region
        %s97 = ssub.s32 %s13, 1
      $region12: #{tpu_custom_call.1} parent=5 // pred_fallthru
        _
      %p98 = scmp.lt.s32.totalorder %s13, 2
      // Predicated region
      $region13: #{tpu_custom_call.1} parent=5 // pred_check
        %p99 = pneg %p98
      $region14: #{tpu_custom_call.1} parent=5 // pred_check_branch
        %101 = sbr.rel (%p99) target = $region16
      $region15: #{tpu_custom_call.1} parent=5 // pred_region
        // Predicated region
        $region17: #{tpu_custom_call.1} parent=15 // pred_check
          %p102 = pneg %p49
        $region18: #{tpu_custom_call.1} parent=15 // pred_check_branch
          %104 = sbr.rel (%p102) target = $region20
        $region19: #{tpu_custom_call.1} parent=15 // pred_region
          %s105 = sand.u32 %s39, 1
          %s106 = scalar_lea.sflag [#allocation6], %s105
          %s107 = sand.u32 %s39, 1
          %s108 = smul.addr %s107, 32
          %s109 = scalar_lea.vmem [#allocation5], %s108
          %s110 = ssub.s32 1, %s20
          %s111 = smul.u32 %s110, %s21
          %s112 = smul.u32 4, %s111
          %114 = vsyncadd %s106, 0
          %s115 = smul.addr %s112, 8
          %s116 = scalar_lea.hbm %s0, %s115
          %s117 = sshll.u32 %s116, 4
          %s118 = int_to_ptr.hbm [resolvable:$true] %s117
          %s119 = sshll.u32 %s109, 4
          %s120 = int_to_ptr.vmem [resolvable:$true] %s119
          %125 = dma.hbm_to_vmem [thread:$0]  %s118, 512, %s120, %s106, 128, 128, 8
        $region20: #{tpu_custom_call.1} parent=15 // pred_fallthru
          _
      $region16: #{tpu_custom_call.1} parent=5 // pred_fallthru
        _
      %p126 = scmp.le.s32.totalorder 1, %s13
      %p127 = scmp.lt.s32.totalorder %s13, 3
      %p128 = pnand %p126, %p127
      %p129 = pneg %p128
      // Predicated region
      $region21: #{tpu_custom_call.1} parent=5 // pred_check
        _
      $region22: #{tpu_custom_call.1} parent=5 // pred_check_branch
        %131 = sbr.rel (%p128) target = $region24
      $region23: #{tpu_custom_call.1} parent=5 // pred_region
        %s132 = ssub.s32 %s13, 1
        %s133 = sand.u32 %s42, 1
        %s134 = scalar_lea.sflag [#allocation6], %s133
        %s135 = sand.u32 %s42, 1
        %s136 = smul.addr %s135, 32
        %s137 = scalar_lea.vmem [#allocation5], %s136
        // Predicated region
        $region25: #{tpu_custom_call.1} parent=23 // pred_check
          %p138 = pneg %p55
        $region26: #{tpu_custom_call.1} parent=23 // pred_check_branch
          %140 = sbr.rel (%p138) target = $region28
        $region27: #{tpu_custom_call.1} parent=23 // pred_region
          %142 = dma.done %s134, 512
        $region28: #{tpu_custom_call.1} parent=23 // pred_fallthru
          _
        %s143 = sand.u32 %s42, 1
        %s144 = scalar_lea.sflag [#allocation6], %s143
        %s145 = sand.u32 %s42, 1
        %s146 = smul.addr %s145, 32
        %s147 = scalar_lea.vmem [#allocation5], %s146
        %p148 = pneg %p55
        %p149 = pneg %p52
        %p150 = pneg %p83
        %p151 = pneg %p80
        %s152 = sand.u32 %s70, 1
        %s153 = scalar_lea.sflag [#allocation7], %s152
        %s154 = sand.u32 %s70, 1
        %s155 = smul.addr %s154, 32
        %s156 = scalar_lea.vmem [#allocation8], %s155
        %s157 = ssub.s32 1, %s22
        %s158 = smul.u32 %s157, %s23
        %s159 = smul.u32 4, %s158
        %s160 = smul.u32 %s22, %s23
        %s161 = smul.u32 4, %s160
        %p162 = scmp.eq.s32.totalorder %s22, 0
        %p163 = scmp.eq.s32.totalorder %s23, 0
        %p164 = pnand %p162, %p163
        %p165 = pneg %p164
        // Predicated region
        $region29: #{tpu_custom_call.1} parent=23 // pred_check
          _
        $region30: #{tpu_custom_call.1} parent=23 // pred_check_branch
          %167 = sbr.rel (%p164) target = $region32
        $region31: #{tpu_custom_call.1} parent=23 // pred_region
          %vm168 = vcmask 0
          %169 = vst.msk [vmem:[#allocation3] sm:$0x1] %vm168, -inf
          %170 = vst.msk [vmem:[#allocation4] sm:$0x1] %vm168, 0.0
        $region32: #{tpu_custom_call.1} parent=23 // pred_fallthru
          _
        // Predicated region
        $region33: #{tpu_custom_call.1} parent=23 // pred_check
          %p171 = pneg %p162
        $region34: #{tpu_custom_call.1} parent=23 // pred_check_branch
          %173 = sbr.rel (%p171) target = $region36
        $region35: #{tpu_custom_call.1} parent=23 // pred_region
          %v174 = vld [vmem:[%s137] sm:$0xff]
          %v175 = vld [vmem:[%s137 + $0x8] sm:$0xff]
          %v176 = vld [vmem:[%s137 + $0x10] sm:$0xff]
          %v177 = vld [vmem:[%s137 + $0x18] sm:$0xff]
          %s178 = smul.u32 %s23, 32
          %s179 = scalar_lea.vmem [#allocation2], %s178
          %180 = vst [vmem:[%s179] sm:$0xff] %v174
          %181 = vst [vmem:[%s179 + $0x8] sm:$0xff] %v175
          %182 = vst [vmem:[%s179 + $0x10] sm:$0xff] %v176
          %183 = vst [vmem:[%s179 + $0x18] sm:$0xff] %v177
          %v184 = vlaneseq
          %v185 = vshrl.u32 %v184, 7
          %v186 = vadd.s32 %v185, 8
          %v187 = vadd.s32 %v185, 16
          %v188 = vadd.s32 %v185, 24
          %v189 = vstv %s178
          %v190 = vadd.s32 %v189, %v185
          %v191 = vadd.s32 %v189, %v186
          %v192 = vadd.s32 %v189, %v187
          %v193 = vadd.s32 %v189, %v188
          %vm194 = vcmp.lt.s32.totalorder %v190, 32
          %vm195 = vcmp.lt.s32.totalorder %v191, 32
          %vm196 = vcmp.lt.s32.totalorder %v192, 32
          %vm197 = vcmp.lt.s32.totalorder %v193, 32
          %v198 = vsel %vm194, %v174, -inf
          %v199 = vsel %vm195, %v175, -inf
          %v200 = vsel %vm196, %v176, -inf
          %v201 = vsel %vm197, %v177, -inf
          %v202 = vld [vmem:[#allocation3] sm:$0x1]
          %v203 = vmax.f32 %v198, %v199
          %v204 = vmax.f32 %v200, %v201
          %v205 = vmax.f32 %v203, %v204
          %v206 = vrot.slane %v205, 4
          %v207 = vmax.f32 %v205, %v206
          %v208 = vrot.slane %v207, 2
          %v209 = vmax.f32 %v207, %v208
          %v210 = vrot.slane %v209, 1
          %v211 = vmax.f32 %v209, %v210
          %212 = vmax.xlane.f32.xlu0 %v211
          %v213 = vpop.xlane.xlu0 %212
          %v214 = vmax.f32 %v202, %v213
          %v216 = vperm.slane %v214, 0
          %217 = vset.pattern.permute.xlu0 0
          %218 = vperm.xlu0 %217, %v216
          %v219 = vpop.permute.xlu0 %218
          %v221 = vsub.f32 %v198, %v219
          %v222 = vsub.f32 %v199, %v219
          %v223 = vsub.f32 %v200, %v219
          %v224 = vsub.f32 %v201, %v219
          %v225 = vmul.f32 %v221, 1.442695
          %v226 = vpow.pop %v225
          %v227 = vmul.f32 %v222, 1.442695
          %v228 = vpow.pop %v227
          %v229 = vmul.f32 %v223, 1.442695
          %v230 = vpow.pop %v229
          %v231 = vmul.f32 %v224, 1.442695
          %v232 = vpow.pop %v231
          %v233 = vadd.f32 %v226, %v228
          %v234 = vadd.f32 %v233, %v230
          %v235 = vadd.f32 %v234, %v232
          %v236 = vrot.slane %v235, 4
          %v237 = vadd.f32 %v235, %v236
          %v238 = vrot.slane %v237, 2
          %v239 = vadd.f32 %v237, %v238
          %v240 = vrot.slane %v239, 1
          %v241 = vadd.f32 %v239, %v240
          %242 = vadd.xlane.f32.xlu0 %v241
          %v243 = vpop.xlane.xlu0 %242
          %vm244 = vcmp.eq.f32.partialorder %v202, -inf
          %v245 = vsub.f32 %v202, %v214
          %v246 = vmul.f32 %v245, 1.442695
          %v247 = vpow.pop %v246
          %v248 = vsel %vm244, 0.0, %v247
          %v249 = vld [vmem:[#allocation4] sm:$0x1]
          %v250 = vmul.f32 %v249, %v248
          %v251 = vadd.f32 %v250, %v243
          %vm252 = vcmask 0
          %253 = vst.msk [vmem:[#allocation4] sm:$0x1] %vm252, %v251
          %254 = vst.msk [vmem:[#allocation3] sm:$0x1] %vm252, %v214
        $region36: #{tpu_custom_call.1} parent=23 // pred_fallthru
          _
        %p255 = scmp.eq.s32.totalorder %s22, 1
        // Predicated region
        $region37: #{tpu_custom_call.1} parent=23 // pred_check
          %p256 = pneg %p255
        $region38: #{tpu_custom_call.1} parent=23 // pred_check_branch
          %258 = sbr.rel (%p256) target = $region40
        $region39: #{tpu_custom_call.1} parent=23 // pred_region
          %s259 = smul.u32 %s23, 32
          %s260 = scalar_lea.vmem [#allocation2], %s259
          %v261 = vld [vmem:[%s260] sm:$0xff]
          %v262 = vld [vmem:[%s260 + $0x8] sm:$0xff]
          %v263 = vld [vmem:[%s260 + $0x10] sm:$0xff]
          %v264 = vld [vmem:[%s260 + $0x18] sm:$0xff]
          %v265 = vld [vmem:[#allocation4] sm:$0x1]
          %v266 = vrcp.pop %v265
          %v267 = vmul.f32 %v265, %v266
          %v268 = vsub.f32 1.0, %v267
          %v269 = vmul.f32 %v266, %v268
          %v270 = vadd.f32 %v266, %v269
          %vm271 = vweird.f32 %v265
          %vm272 = vweird.f32 %v266
          %vm273 = vmor %vm271, %vm272
          %v274 = vsel %vm273, %v266, %v270
          %v275 = vand.u32 2147483647, %v265
          %vm276 = vcmp.eq.f32.partialorder %v275, 8.507059e+37
          %v277 = vand.u32 %v265, 2147483648
          %v278 = vor.u32 1.1754944e-38, %v277
          %v279 = vsel %vm276, %v278, %v274
          %v280 = vmul.f32 1.0, %v279
          %v281 = vld [vmem:[#allocation3] sm:$0x1]
          %v283 = vperm.slane %v281, 0
          %284 = vset.pattern.permute.xlu0 0
          %285 = vperm.xlu0 %284, %v283
          %v286 = vpop.permute.xlu0 %285
          %v288 = vsub.f32 %v261, %v286
          %v289 = vsub.f32 %v262, %v286
          %v290 = vsub.f32 %v263, %v286
          %v291 = vsub.f32 %v264, %v286
          %v292 = vmul.f32 %v288, 1.442695
          %v293 = vpow.pop %v292
          %v294 = vmul.f32 %v289, 1.442695
          %v295 = vpow.pop %v294
          %v296 = vmul.f32 %v290, 1.442695
          %v297 = vpow.pop %v296
          %v298 = vmul.f32 %v291, 1.442695
          %v299 = vpow.pop %v298
          %v301 = vperm.slane %v280, 0
          %302 = vset.pattern.permute.xlu0 0
          %303 = vperm.xlu0 %302, %v301
          %v304 = vpop.permute.xlu0 %303
          %v306 = vmul.f32 %v293, %v304
          %v307 = vmul.f32 %v295, %v304
          %v308 = vmul.f32 %v297, %v304
          %v309 = vmul.f32 %v299, %v304
          %310 = vst [vmem:[%s156] sm:$0xff] %v306
          %311 = vst [vmem:[%s156 + $0x8] sm:$0xff] %v307
          %312 = vst [vmem:[%s156 + $0x10] sm:$0xff] %v308
          %313 = vst [vmem:[%s156 + $0x18] sm:$0xff] %v309
        $region40: #{tpu_custom_call.1} parent=23 // pred_fallthru
          _
        %s314 = sand.u32 %s70, 1
        %s315 = scalar_lea.sflag [#allocation7], %s314
        %s316 = sand.u32 %s70, 1
        %s317 = smul.addr %s316, 32
        %s318 = scalar_lea.vmem [#allocation8], %s317
        // Predicated region
        $region41: #{tpu_custom_call.1} parent=23 // pred_check
          %p319 = pneg %p80
        $region42: #{tpu_custom_call.1} parent=23 // pred_check_branch
          %321 = sbr.rel (%p319) target = $region44
        $region43: #{tpu_custom_call.1} parent=23 // pred_region
          %s322 = smul.u32 %s22, %s23
          %s323 = smul.u32 4, %s322
          %325 = vsyncadd %s315, 0
          %s326 = smul.addr %s323, 8
          %s327 = scalar_lea.hbm %s1, %s326
          %s328 = sshll.u32 %s318, 4
          %s329 = int_to_ptr.vmem [resolvable:$true] %s328
          %s330 = sshll.u32 %s327, 4
          %s331 = int_to_ptr.hbm [resolvable:$true] %s330
          %336 = dma.vmem_to_hbm [thread:$0]  %s329, 512, %s331, %s315, 128, 128, 8
        $region44: #{tpu_custom_call.1} parent=23 // pred_fallthru
          _
      $region24: #{tpu_custom_call.1} parent=5 // pred_fallthru
        _
      %p337 = scmp.le.s32.totalorder 2, %s13
      // Predicated region
      $region45: #{tpu_custom_call.1} parent=5 // pred_check
        %p338 = pneg %p337
      $region46: #{tpu_custom_call.1} parent=5 // pred_check_branch
        %340 = sbr.rel (%p338) target = $region48
      $region47: #{tpu_custom_call.1} parent=5 // pred_region
        %s341 = ssub.s32 %s13, 2
        // Predicated region
        $region49: #{tpu_custom_call.1} parent=47 // pred_check
          %p342 = pneg %p86
        $region50: #{tpu_custom_call.1} parent=47 // pred_check_branch
          %344 = sbr.rel (%p342) target = $region52
        $region51: #{tpu_custom_call.1} parent=47 // pred_region
          %s345 = sand.u32 %s71, 1
          %s346 = scalar_lea.sflag [#allocation7], %s345
          %s347 = sand.u32 %s71, 1
          %s348 = smul.addr %s347, 32
          %s349 = scalar_lea.vmem [#allocation8], %s348
          %351 = dma.done %s346, 512
        $region52: #{tpu_custom_call.1} parent=47 // pred_fallthru
          _
      $region48: #{tpu_custom_call.1} parent=5 // pred_fallthru
        _
    $region6: #{tpu_custom_call.1} parent=1 // loop_footer
      %s17 = sadd.s32 1, %s13
    $region7: #{tpu_custom_call.1} parent=1 // loop_footer_branch
      %12 = sbr.rel target = $region3
    $region8: #{tpu_custom_call.1} parent=1 // loop_exit
      _
    %352 = vsyncpa [#allocation6], 1
    %s353 = scalar_lea.sflag [#allocation6], 1
    %354 = vsyncpa %s353, 1
    %355 = vsyncpa [#allocation7], 1
    %s356 = scalar_lea.sflag [#allocation7], 1
    %357 = vsyncpa %s356, 1

</llo_original>
